<compile_context>
chip_gen: v6e
topology: v6e:2x2x1
jax: 0.10.0
libtpu: 0.0.40
codegen_flags: <defaults>
</compile_context>

<pallas_src>
import functools

import numpy as np
import jax
import jax.numpy as jnp
from jax import lax
from jax.experimental import pallas as pl
from jax.experimental.pallas import tpu as pltpu

F32_EPS = float(np.finfo(np.float32).eps)
LANES = 128


def _round_up(a, b):
    return -(-a // b) * b


# --------------------------------------------------------------------------
# Fused kernel: boundary-node Green's function + interface loss partial sums.
# --------------------------------------------------------------------------
def _fused_boundary_kernel(q_ref, xqx_ref, xqy_ref, xqz_ref,       # SMEM (n_q,)
                           px_ref, py_ref, pz_ref,                 # VMEM (R, 128)
                           nx_ref, ny_ref, nz_ref, mask_ref,       # VMEM (R, 128)
                           u_ref,                                  # VMEM (B, 7, R, 128)
                           out_ref,                                # VMEM (1, 2, 128)
                           *, n_q, sub_rows, n_sub, eps2, inv_dn,
                           c_x, c_y, c_z, e_in, e_out):
    def body(it, carry):
        s1, s2 = carry
        r0 = pl.multiple_of(it * sub_rows, sub_rows)
        rs = pl.ds(r0, sub_rows)

        px = px_ref[rs, :]                       # (S, 128)
        py = py_ref[rs, :]
        pz = pz_ref[rs, :]

        # ---- Coulomb Green's function (potential + gradient) at the points ----
        # TODO(synk): for n_q in the hundreds, switch this unroll to an MXU
        # matmul formulation (r^2 = |p|^2 + |xq|^2 - 2 P @ XQ^T).
        pot = jnp.zeros_like(px)
        ggx = jnp.zeros_like(px)
        ggy = jnp.zeros_like(px)
        ggz = jnp.zeros_like(px)
        for j in range(n_q):                     # static unroll, small charge set
            qj = q_ref[j]                        # already scaled by 1/(4*pi*e_in)
            dxv = px - xqx_ref[j]
            dyv = py - xqy_ref[j]
            dzv = pz - xqz_ref[j]
            r2 = dxv * dxv + dyv * dyv + dzv * dzv
            rinv = lax.rsqrt(jnp.maximum(r2, eps2))     # torch: r[r==0] = eps
            pot = pot + qj * rinv
            coef = (-qj) * (rinv * rinv * rinv)         # grad is 0 at r==0 anyway
            ggx = ggx + coef * dxv
            ggy = ggy + coef * dyv
            ggz = ggz + coef * dzv

        m = mask_ref[rs, :]                      # (S, 128) validity mask for padding
        nx = nx_ref[rs, :]
        ny = ny_ref[rs, :]
        nz = nz_ref[rs, :]
        e_gcnd = e_in * (ggx * nx + ggy * ny + ggz * nz)   # per-point, pre-broadcast

        u_blk = u_ref[:, :, rs, :]               # (B, 7, S, 128), loaded once
        uc_raw = u_blk[:, 0]                     # (B, S, 128)

        # ---- loss term 1: MSE(output/dn + g_c, output/dn) on the boundary ----
        # Keep torch's rounding behaviour: (uc + g) - uc, not just g.
        uc = uc_raw * inv_dn
        d1 = ((uc + pot) - uc) * m
        s1 = s1 + jnp.sum(jnp.sum(d1 * d1, axis=0), axis=0, keepdims=True)

        # ---- loss term 2: interface flux-jump condition ----
        # compute_gradients() divides by data_norm a second time -> constants
        # c_* already contain 1/(data_norm^2 * d{x,y,z}).
        pxpos = nx > 0.0
        pypos = ny > 0.0
        pzpos = nz > 0.0

        d_l = uc_raw - u_blk[:, 1]               # center - left
        d_r = u_blk[:, 2] - uc_raw               # right  - center
        gx_in = jnp.where(pxpos, d_l, d_r) * c_x
        gx_out = jnp.where(pxpos, d_r, d_l) * c_x

        d_b = uc_raw - u_blk[:, 3]               # center - below
        d_a = u_blk[:, 4] - uc_raw               # above  - center
        gy_in = jnp.where(pypos, d_b, d_a) * c_y
        gy_out = jnp.where(pypos, d_a, d_b) * c_y

        d_k = uc_raw - u_blk[:, 5]               # center - back
        d_f = u_blk[:, 6] - uc_raw               # front  - center
        gz_in = jnp.where(pzpos, d_k, d_f) * c_z
        gz_out = jnp.where(pzpos, d_f, d_k) * c_z

        nd_in = gx_in * nx + gy_in * ny + gz_in * nz
        nd_out = gx_out * nx + gy_out * ny + gz_out * nz
        d2 = (e_in * nd_in + e_gcnd - e_out * nd_out) * m
        s2 = s2 + jnp.sum(jnp.sum(d2 * d2, axis=0), axis=0, keepdims=True)
        return s1, s2

    zero = jnp.zeros((1, LANES), jnp.float32)
    s1, s2 = lax.fori_loop(0, n_sub, body, (zero, zero))
    out_ref[0] = jnp.concatenate([s1, s2], axis=0)       # (2, 128) lane-partials


def fused_boundary_loss_partials(q_scaled, xqx, xqy, xqz,
                                 px, py, pz, nxp, nyp, nzp, maskp, u_all,
                                 *, n_q, batch, row_tile, num_chunks, sub_rows,
                                 inv_dn, c_x, c_y, c_z, e_in, e_out):
    kernel = functools.partial(
        _fused_boundary_kernel,
        n_q=n_q, sub_rows=sub_rows, n_sub=row_tile // sub_rows,
        eps2=float(F32_EPS) ** 2, inv_dn=inv_dn,
        c_x=c_x, c_y=c_y, c_z=c_z, e_in=e_in, e_out=e_out)

    smem_spec = pl.BlockSpec(memory_space=pltpu.MemorySpace.SMEM)
    pt_spec = pl.BlockSpec((row_tile, LANES), lambda i: (i, 0))
    u_spec = pl.BlockSpec((batch, 7, row_tile, LANES), lambda i: (0, 0, i, 0))
    out_spec = pl.BlockSpec((1, 2, LANES), lambda i: (i, 0, 0))

    return pl.pallas_call(
        kernel,
        out_shape=jax.ShapeDtypeStruct((num_chunks, 2, LANES), jnp.float32),
        grid=(num_chunks,),
        in_specs=[smem_spec, smem_spec, smem_spec, smem_spec,
                  pt_spec, pt_spec, pt_spec,
                  pt_spec, pt_spec, pt_spec, pt_spec,
                  u_spec],
        out_specs=out_spec,
        compiler_params=pltpu.CompilerParams(
            dimension_semantics=("parallel",)),   # no carried state -> megacore OK
    )(q_scaled, xqx, xqy, xqz, px, py, pz, nxp, nyp, nzp, maskp, u_all)


# --------------------------------------------------------------------------
# Forward pass (host-side static index prep, one flat gather, kernel, reduce)
# --------------------------------------------------------------------------
def interface_boundary_loss(output, q, xq, *, cfg, weight, boundary_idx, normals,
                            points_np, e_in, e_out, dx, dy, dz, data_norm=1.0,
                            row_block=128, sub_rows=8):
    nnx = cfg['globals']['nnx']
    nny = cfg['globals']['nny']
    nnz = cfg['globals']['nnz']
    B = int(output.shape[0])
    x_idx, y_idx, z_idx = boundary_idx          # static numpy index arrays
    nb = int(x_idx.shape[0])
    n_q = int(q.shape[0])
    nx_np, ny_np, nz_np = normals

    # ---- host-side static prep (numpy, free at runtime) ----
    s1, s2 = nny * nnz, nnz

    def flat(xi, yi, zi):
        return (xi.astype(np.int64) * s1 + yi.astype(np.int64) * s2
                + zi.astype(np.int64))

    flat_stencil = np.stack([
        flat(x_idx, y_idx, z_idx),          # 0 center
        flat(x_idx - 1, y_idx, z_idx),      # 1 left
        flat(x_idx + 1, y_idx, z_idx),      # 2 right
        flat(x_idx, y_idx - 1, z_idx),      # 3 below
        flat(x_idx, y_idx + 1, z_idx),      # 4 above
        flat(x_idx, y_idx, z_idx - 1),      # 5 back
        flat(x_idx, y_idx, z_idx + 1),      # 6 front
    ], axis=0)                              # (7, nb)

    # ---- sublane-dense (rows, 128) layout + tiling of the boundary axis ----
    rows_needed = max(1, _round_up(nb, LANES) // LANES)
    # keep the per-buffer u block (B,7,row_tile,128) under ~4 MiB
    vmem_cap_rows = max(sub_rows,
                        (((4 << 20) // (B * 7 * LANES * 4)) // sub_rows) * sub_rows)
    row_tile = min(int(row_block), vmem_cap_rows, _round_up(rows_needed, sub_rows))
    row_tile = max(sub_rows, (row_tile // sub_rows) * sub_rows)
    rows_padded = _round_up(rows_needed, row_tile)
    num_chunks = rows_padded // row_tile
    nbp = rows_padded * LANES

    # boundary-node coordinates only (Green's fn never evaluated anywhere else)
    bpts = np.asarray(points_np, np.float32)[flat_stencil[0]]     # (nb, 3)

    def pad2d(a):
        buf = np.zeros((nbp,), np.float32)
        buf[:nb] = np.asarray(a, np.float32)
        return jnp.asarray(buf.reshape(rows_padded, LANES))

    px = pad2d(bpts[:, 0])
    py = pad2d(bpts[:, 1])
    pz = pad2d(bpts[:, 2])
    nxp = pad2d(nx_np)
    nyp = pad2d(ny_np)
    nzp = pad2d(nz_np)
    maskp = pad2d(np.ones((nb,), np.float32))

    # stencil indices padded on the host (index 0, masked in-kernel) so the
    # gather comes out pre-padded -> no XLA-side pad / transpose.
    flat_pad = np.zeros((7, nbp), np.int64)
    flat_pad[:, :nb] = flat_stencil
    flat_all = jnp.asarray(flat_pad.reshape(-1), jnp.int32)       # (7*nbp,)

    # ---- charges: torch.isclose(q, 0.) drop == zero-out + fold 1/(4*pi*e_in)
    q32 = q.astype(jnp.float32)
    inv_4pi_ein = float(1.0 / (e_in * 4.0 * np.pi))
    q_scaled = jnp.where(jnp.abs(q32) <= 1e-8, 0.0, q32) * jnp.float32(inv_4pi_ein)
    xq32 = xq.astype(jnp.float32)

    # ---- single flat gather on the RAW output (no full-volume scaling pass) ----
    out_flat = output[:, 0].reshape(B, -1)                         # view, no copy
    u_all = jnp.take(out_flat, flat_all, axis=1).astype(jnp.float32)
    u_all = u_all.reshape(B, 7, rows_padded, LANES)                # metadata-only

    inv_dn = float(1.0 / data_norm)
    inv_dn2 = inv_dn * inv_dn            # forward /dn + compute_gradients /dn
    partials = fused_boundary_loss_partials(
        q_scaled, xq32[:, 0], xq32[:, 1], xq32[:, 2],
        px, py, pz, nxp, nyp, nzp, maskp, u_all,
        n_q=n_q, batch=B, row_tile=row_tile, num_chunks=num_chunks,
        sub_rows=sub_rows, inv_dn=inv_dn,
        c_x=float(inv_dn2 / dx), c_y=float(inv_dn2 / dy), c_z=float(inv_dn2 / dz),
        e_in=float(e_in), e_out=float(e_out))

    sums = jnp.sum(partials, axis=(0, 2))                          # (2,)
    denom = float(B * nb)                # F.mse_loss mean over (B, Nb) for both terms
    loss = (sums[0] + sums[1]) * (float(weight) / denom)
    return loss


# --------------------------------------------------------------------------
if __name__ == "__main__":
    nnx = nny = nnz = 16
    B = 2
    NQ = 8
    dx = dy = dz = 1.0 / (nnx - 1)
    e_in, e_out = 1.0, 80.0
    bound_weight = 0.7
    data_norm = 1.0
    cfg = {'globals': {'nnx': nnx, 'nny': nny, 'nnz': nnz}}

    center = np.array([(nnx - 1) * dx / 2.0,
                       (nny - 1) * dy / 2.0,
                       (nnz - 1) * dz / 2.0], np.float32)
    radius = 0.3

    # grid points, row-major over (X, Y, Z) so reshape(nnx,nny,nnz) matches torch
    xs = np.arange(nnx, dtype=np.float32) * dx
    ys = np.arange(nny, dtype=np.float32) * dy
    zs = np.arange(nnz, dtype=np.float32) * dz
    X, Y, Z = np.meshgrid(xs, ys, zs, indexing='ij')
    points_np = np.stack([X.ravel(), Y.ravel(), Z.ravel()], axis=-1).astype(np.float32)

    # spherical-interface boundary mask (restricted to interior nodes so the
    # +-1 neighbour stencil stays in-bounds, matching valid torch usage)
    dist = np.sqrt((X - center[0]) ** 2 + (Y - center[1]) ** 2 + (Z - center[2]) ** 2)
    interior = np.zeros((nnx, nny, nnz), bool)
    interior[1:-1, 1:-1, 1:-1] = True
    boundary = (np.abs(dist - radius) < 0.5 * dx) & interior
    x_idx, y_idx, z_idx = np.nonzero(boundary)   # same ordering as torch.nonzero
    assert x_idx.size > 0

    xn = x_idx * dx - center[0]
    yn = y_idx * dy - center[1]
    zn = z_idx * dz - center[2]
    nrm = np.sqrt(xn ** 2 + yn ** 2 + zn ** 2)
    normals = ((xn / nrm).astype(np.float32),
               (yn / nrm).astype(np.float32),
               (zn / nrm).astype(np.float32))

    key = jax.random.PRNGKey(0)
    k1, k2, k3 = jax.random.split(key, 3)
    output = jax.random.normal(k1, (B, 1, nnx, nny, nnz), jnp.float32)
    q = jax.random.uniform(k2, (NQ,), jnp.float32, minval=0.5, maxval=1.5)
    xq = jnp.asarray(center) + 0.1 * jax.random.normal(k3, (NQ, 3), jnp.float32)

    loss = interface_boundary_loss(
        output, q, xq, cfg=cfg, weight=bound_weight,
        boundary_idx=(x_idx, y_idx, z_idx), normals=normals, points_np=points_np,
        e_in=e_in, e_out=e_out, dx=dx, dy=dy, dz=dz, data_norm=data_norm)
    loss = jax.block_until_ready(loss)
    assert np.isfinite(float(loss)), "loss is not finite"
    print("KERNEL_OK")
</pallas_src>

<mosaic_0001>
module attributes {stable_mosaic.version = 11 : i64} {
  func.func @_fused_boundary_kernel(%arg0: i32, %arg1: memref<8xf32, #tpu.memory_space<smem>>, %arg2: memref<8xf32, #tpu.memory_space<smem>>, %arg3: memref<8xf32, #tpu.memory_space<smem>>, %arg4: memref<8xf32, #tpu.memory_space<smem>>, %arg5: memref<8x128xf32, #tpu.memory_space<vmem>>, %arg6: memref<8x128xf32, #tpu.memory_space<vmem>>, %arg7: memref<8x128xf32, #tpu.memory_space<vmem>>, %arg8: memref<8x128xf32, #tpu.memory_space<vmem>>, %arg9: memref<8x128xf32, #tpu.memory_space<vmem>>, %arg10: memref<8x128xf32, #tpu.memory_space<vmem>>, %arg11: memref<8x128xf32, #tpu.memory_space<vmem>>, %arg12: memref<2x7x8x128xf32, #tpu.memory_space<vmem>>, %arg13: memref<1x2x128xf32, #tpu.memory_space<vmem>>) attributes {dimension_semantics = [#tpu.dimension_semantics<parallel>], iteration_bounds = array<i64: 1>, scalar_prefetch = 0 : i64, scratch_operands = 0 : i64, tpu.core_type = #tpu.core_type<tc>, window_params = [{transform_indices = @transform_0, window_bounds = array<i64: 8>}, {transform_indices = @transform_1, window_bounds = array<i64: 8>}, {transform_indices = @transform_2, window_bounds = array<i64: 8>}, {transform_indices = @transform_3, window_bounds = array<i64: 8>}, {transform_indices = @transform_4, window_bounds = array<i64: 8, 128>}, {transform_indices = @transform_5, window_bounds = array<i64: 8, 128>}, {transform_indices = @transform_6, window_bounds = array<i64: 8, 128>}, {transform_indices = @transform_7, window_bounds = array<i64: 8, 128>}, {transform_indices = @transform_8, window_bounds = array<i64: 8, 128>}, {transform_indices = @transform_9, window_bounds = array<i64: 8, 128>}, {transform_indices = @transform_10, window_bounds = array<i64: 8, 128>}, {transform_indices = @transform_11, window_bounds = array<i64: 2, 7, 8, 128>}, {transform_indices = @transform_12, window_bounds = array<i64: 1, 2, 128>}]} {
    %cst = arith.constant 0.000000e+00 : f32
    %0 = vector.broadcast %cst : f32 to vector<1x128xf32>
    %c0_i32 = arith.constant 0 : i32
    %c8_i32 = arith.constant 8 : i32
    %1 = arith.muli %c0_i32, %c8_i32 : i32
    %2 = tpu.assume_multiple %1, 8 : i32
    %3 = arith.index_cast %2 : i32 to index
    %c0 = arith.constant 0 : index
    %4 = vector.load %arg5[%3, %c0] : memref<8x128xf32, #tpu.memory_space<vmem>>, vector<8x128xf32>
    %5 = arith.index_cast %2 : i32 to index
    %c0_0 = arith.constant 0 : index
    %6 = vector.load %arg6[%5, %c0_0] : memref<8x128xf32, #tpu.memory_space<vmem>>, vector<8x128xf32>
    %7 = arith.index_cast %2 : i32 to index
    %c0_1 = arith.constant 0 : index
    %8 = vector.load %arg7[%7, %c0_1] : memref<8x128xf32, #tpu.memory_space<vmem>>, vector<8x128xf32>
    %cst_2 = arith.constant 0.000000e+00 : f32
    %9 = vector.broadcast %cst_2 : f32 to vector<8x128xf32>
    %cst_3 = arith.constant 0.000000e+00 : f32
    %10 = vector.broadcast %cst_3 : f32 to vector<8x128xf32>
    %cst_4 = arith.constant 0.000000e+00 : f32
    %11 = vector.broadcast %cst_4 : f32 to vector<8x128xf32>
    %cst_5 = arith.constant 0.000000e+00 : f32
    %12 = vector.broadcast %cst_5 : f32 to vector<8x128xf32>
    %c0_6 = arith.constant 0 : index
    %13 = memref.load %arg1[%c0_6] : memref<8xf32, #tpu.memory_space<smem>>
    %c0_7 = arith.constant 0 : index
    %14 = memref.load %arg2[%c0_7] : memref<8xf32, #tpu.memory_space<smem>>
    %15 = vector.broadcast %14 : f32 to vector<8x128xf32>
    %16 = arith.subf %4, %15 : vector<8x128xf32>
    %c0_8 = arith.constant 0 : index
    %17 = memref.load %arg3[%c0_8] : memref<8xf32, #tpu.memory_space<smem>>
    %18 = vector.broadcast %17 : f32 to vector<8x128xf32>
    %19 = arith.subf %6, %18 : vector<8x128xf32>
    %c0_9 = arith.constant 0 : index
    %20 = memref.load %arg4[%c0_9] : memref<8xf32, #tpu.memory_space<smem>>
    %21 = vector.broadcast %20 : f32 to vector<8x128xf32>
    %22 = arith.subf %8, %21 : vector<8x128xf32>
    %23 = arith.mulf %16, %16 : vector<8x128xf32>
    %24 = arith.mulf %19, %19 : vector<8x128xf32>
    %25 = arith.addf %23, %24 : vector<8x128xf32>
    %26 = arith.mulf %22, %22 : vector<8x128xf32>
    %27 = arith.addf %25, %26 : vector<8x128xf32>
    %cst_10 = arith.constant 1.42108547E-14 : f32
    %28 = vector.broadcast %cst_10 : f32 to vector<8x128xf32>
    %29 = arith.maximumf %27, %28 : vector<8x128xf32>
    %30 = math.rsqrt %29 : vector<8x128xf32>
    %31 = vector.broadcast %13 : f32 to vector<8x128xf32>
    %32 = arith.mulf %31, %30 : vector<8x128xf32>
    %33 = arith.addf %9, %32 : vector<8x128xf32>
    %cst_11 = arith.constant 0.000000e+00 : f32
    %34 = arith.subf %cst_11, %13 : f32
    %35 = arith.mulf %30, %30 : vector<8x128xf32>
    %36 = arith.mulf %35, %30 : vector<8x128xf32>
    %37 = vector.broadcast %34 : f32 to vector<8x128xf32>
    %38 = arith.mulf %37, %36 : vector<8x128xf32>
    %39 = arith.mulf %38, %16 : vector<8x128xf32>
    %40 = arith.addf %10, %39 : vector<8x128xf32>
    %41 = arith.mulf %38, %19 : vector<8x128xf32>
    %42 = arith.addf %11, %41 : vector<8x128xf32>
    %43 = arith.mulf %38, %22 : vector<8x128xf32>
    %44 = arith.addf %12, %43 : vector<8x128xf32>
    %c1 = arith.constant 1 : index
    %45 = memref.load %arg1[%c1] : memref<8xf32, #tpu.memory_space<smem>>
    %c1_12 = arith.constant 1 : index
    %46 = memref.load %arg2[%c1_12] : memref<8xf32, #tpu.memory_space<smem>>
    %47 = vector.broadcast %46 : f32 to vector<8x128xf32>
    %48 = arith.subf %4, %47 : vector<8x128xf32>
    %c1_13 = arith.constant 1 : index
    %49 = memref.load %arg3[%c1_13] : memref<8xf32, #tpu.memory_space<smem>>
    %50 = vector.broadcast %49 : f32 to vector<8x128xf32>
    %51 = arith.subf %6, %50 : vector<8x128xf32>
    %c1_14 = arith.constant 1 : index
    %52 = memref.load %arg4[%c1_14] : memref<8xf32, #tpu.memory_space<smem>>
    %53 = vector.broadcast %52 : f32 to vector<8x128xf32>
    %54 = arith.subf %8, %53 : vector<8x128xf32>
    %55 = arith.mulf %48, %48 : vector<8x128xf32>
    %56 = arith.mulf %51, %51 : vector<8x128xf32>
    %57 = arith.addf %55, %56 : vector<8x128xf32>
    %58 = arith.mulf %54, %54 : vector<8x128xf32>
    %59 = arith.addf %57, %58 : vector<8x128xf32>
    %cst_15 = arith.constant 1.42108547E-14 : f32
    %60 = vector.broadcast %cst_15 : f32 to vector<8x128xf32>
    %61 = arith.maximumf %59, %60 : vector<8x128xf32>
    %62 = math.rsqrt %61 : vector<8x128xf32>
    %63 = vector.broadcast %45 : f32 to vector<8x128xf32>
    %64 = arith.mulf %63, %62 : vector<8x128xf32>
    %65 = arith.addf %33, %64 : vector<8x128xf32>
    %cst_16 = arith.constant 0.000000e+00 : f32
    %66 = arith.subf %cst_16, %45 : f32
    %67 = arith.mulf %62, %62 : vector<8x128xf32>
    %68 = arith.mulf %67, %62 : vector<8x128xf32>
    %69 = vector.broadcast %66 : f32 to vector<8x128xf32>
    %70 = arith.mulf %69, %68 : vector<8x128xf32>
    %71 = arith.mulf %70, %48 : vector<8x128xf32>
    %72 = arith.addf %40, %71 : vector<8x128xf32>
    %73 = arith.mulf %70, %51 : vector<8x128xf32>
    %74 = arith.addf %42, %73 : vector<8x128xf32>
    %75 = arith.mulf %70, %54 : vector<8x128xf32>
    %76 = arith.addf %44, %75 : vector<8x128xf32>
    %c2 = arith.constant 2 : index
    %77 = memref.load %arg1[%c2] : memref<8xf32, #tpu.memory_space<smem>>
    %c2_17 = arith.constant 2 : index
    %78 = memref.load %arg2[%c2_17] : memref<8xf32, #tpu.memory_space<smem>>
    %79 = vector.broadcast %78 : f32 to vector<8x128xf32>
    %80 = arith.subf %4, %79 : vector<8x128xf32>
    %c2_18 = arith.constant 2 : index
    %81 = memref.load %arg3[%c2_18] : memref<8xf32, #tpu.memory_space<smem>>
    %82 = vector.broadcast %81 : f32 to vector<8x128xf32>
    %83 = arith.subf %6, %82 : vector<8x128xf32>
    %c2_19 = arith.constant 2 : index
    %84 = memref.load %arg4[%c2_19] : memref<8xf32, #tpu.memory_space<smem>>
    %85 = vector.broadcast %84 : f32 to vector<8x128xf32>
    %86 = arith.subf %8, %85 : vector<8x128xf32>
    %87 = arith.mulf %80, %80 : vector<8x128xf32>
    %88 = arith.mulf %83, %83 : vector<8x128xf32>
    %89 = arith.addf %87, %88 : vector<8x128xf32>
    %90 = arith.mulf %86, %86 : vector<8x128xf32>
    %91 = arith.addf %89, %90 : vector<8x128xf32>
    %cst_20 = arith.constant 1.42108547E-14 : f32
    %92 = vector.broadcast %cst_20 : f32 to vector<8x128xf32>
    %93 = arith.maximumf %91, %92 : vector<8x128xf32>
    %94 = math.rsqrt %93 : vector<8x128xf32>
    %95 = vector.broadcast %77 : f32 to vector<8x128xf32>
    %96 = arith.mulf %95, %94 : vector<8x128xf32>
    %97 = arith.addf %65, %96 : vector<8x128xf32>
    %cst_21 = arith.constant 0.000000e+00 : f32
    %98 = arith.subf %cst_21, %77 : f32
    %99 = arith.mulf %94, %94 : vector<8x128xf32>
    %100 = arith.mulf %99, %94 : vector<8x128xf32>
    %101 = vector.broadcast %98 : f32 to vector<8x128xf32>
    %102 = arith.mulf %101, %100 : vector<8x128xf32>
    %103 = arith.mulf %102, %80 : vector<8x128xf32>
    %104 = arith.addf %72, %103 : vector<8x128xf32>
    %105 = arith.mulf %102, %83 : vector<8x128xf32>
    %106 = arith.addf %74, %105 : vector<8x128xf32>
    %107 = arith.mulf %102, %86 : vector<8x128xf32>
    %108 = arith.addf %76, %107 : vector<8x128xf32>
    %c3 = arith.constant 3 : index
    %109 = memref.load %arg1[%c3] : memref<8xf32, #tpu.memory_space<smem>>
    %c3_22 = arith.constant 3 : index
    %110 = memref.load %arg2[%c3_22] : memref<8xf32, #tpu.memory_space<smem>>
    %111 = vector.broadcast %110 : f32 to vector<8x128xf32>
    %112 = arith.subf %4, %111 : vector<8x128xf32>
    %c3_23 = arith.constant 3 : index
    %113 = memref.load %arg3[%c3_23] : memref<8xf32, #tpu.memory_space<smem>>
    %114 = vector.broadcast %113 : f32 to vector<8x128xf32>
    %115 = arith.subf %6, %114 : vector<8x128xf32>
    %c3_24 = arith.constant 3 : index
    %116 = memref.load %arg4[%c3_24] : memref<8xf32, #tpu.memory_space<smem>>
    %117 = vector.broadcast %116 : f32 to vector<8x128xf32>
    %118 = arith.subf %8, %117 : vector<8x128xf32>
    %119 = arith.mulf %112, %112 : vector<8x128xf32>
    %120 = arith.mulf %115, %115 : vector<8x128xf32>
    %121 = arith.addf %119, %120 : vector<8x128xf32>
    %122 = arith.mulf %118, %118 : vector<8x128xf32>
    %123 = arith.addf %121, %122 : vector<8x128xf32>
    %cst_25 = arith.constant 1.42108547E-14 : f32
    %124 = vector.broadcast %cst_25 : f32 to vector<8x128xf32>
    %125 = arith.maximumf %123, %124 : vector<8x128xf32>
    %126 = math.rsqrt %125 : vector<8x128xf32>
    %127 = vector.broadcast %109 : f32 to vector<8x128xf32>
    %128 = arith.mulf %127, %126 : vector<8x128xf32>
    %129 = arith.addf %97, %128 : vector<8x128xf32>
    %cst_26 = arith.constant 0.000000e+00 : f32
    %130 = arith.subf %cst_26, %109 : f32
    %131 = arith.mulf %126, %126 : vector<8x128xf32>
    %132 = arith.mulf %131, %126 : vector<8x128xf32>
    %133 = vector.broadcast %130 : f32 to vector<8x128xf32>
    %134 = arith.mulf %133, %132 : vector<8x128xf32>
    %135 = arith.mulf %134, %112 : vector<8x128xf32>
    %136 = arith.addf %104, %135 : vector<8x128xf32>
    %137 = arith.mulf %134, %115 : vector<8x128xf32>
    %138 = arith.addf %106, %137 : vector<8x128xf32>
    %139 = arith.mulf %134, %118 : vector<8x128xf32>
    %140 = arith.addf %108, %139 : vector<8x128xf32>
    %c4 = arith.constant 4 : index
    %141 = memref.load %arg1[%c4] : memref<8xf32, #tpu.memory_space<smem>>
    %c4_27 = arith.constant 4 : index
    %142 = memref.load %arg2[%c4_27] : memref<8xf32, #tpu.memory_space<smem>>
    %143 = vector.broadcast %142 : f32 to vector<8x128xf32>
    %144 = arith.subf %4, %143 : vector<8x128xf32>
    %c4_28 = arith.constant 4 : index
    %145 = memref.load %arg3[%c4_28] : memref<8xf32, #tpu.memory_space<smem>>
    %146 = vector.broadcast %145 : f32 to vector<8x128xf32>
    %147 = arith.subf %6, %146 : vector<8x128xf32>
    %c4_29 = arith.constant 4 : index
    %148 = memref.load %arg4[%c4_29] : memref<8xf32, #tpu.memory_space<smem>>
    %149 = vector.broadcast %148 : f32 to vector<8x128xf32>
    %150 = arith.subf %8, %149 : vector<8x128xf32>
    %151 = arith.mulf %144, %144 : vector<8x128xf32>
    %152 = arith.mulf %147, %147 : vector<8x128xf32>
    %153 = arith.addf %151, %152 : vector<8x128xf32>
    %154 = arith.mulf %150, %150 : vector<8x128xf32>
    %155 = arith.addf %153, %154 : vector<8x128xf32>
    %cst_30 = arith.constant 1.42108547E-14 : f32
    %156 = vector.broadcast %cst_30 : f32 to vector<8x128xf32>
    %157 = arith.maximumf %155, %156 : vector<8x128xf32>
    %158 = math.rsqrt %157 : vector<8x128xf32>
    %159 = vector.broadcast %141 : f32 to vector<8x128xf32>
    %160 = arith.mulf %159, %158 : vector<8x128xf32>
    %161 = arith.addf %129, %160 : vector<8x128xf32>
    %cst_31 = arith.constant 0.000000e+00 : f32
    %162 = arith.subf %cst_31, %141 : f32
    %163 = arith.mulf %158, %158 : vector<8x128xf32>
    %164 = arith.mulf %163, %158 : vector<8x128xf32>
    %165 = vector.broadcast %162 : f32 to vector<8x128xf32>
    %166 = arith.mulf %165, %164 : vector<8x128xf32>
    %167 = arith.mulf %166, %144 : vector<8x128xf32>
    %168 = arith.addf %136, %167 : vector<8x128xf32>
    %169 = arith.mulf %166, %147 : vector<8x128xf32>
    %170 = arith.addf %138, %169 : vector<8x128xf32>
    %171 = arith.mulf %166, %150 : vector<8x128xf32>
    %172 = arith.addf %140, %171 : vector<8x128xf32>
    %c5 = arith.constant 5 : index
    %173 = memref.load %arg1[%c5] : memref<8xf32, #tpu.memory_space<smem>>
    %c5_32 = arith.constant 5 : index
    %174 = memref.load %arg2[%c5_32] : memref<8xf32, #tpu.memory_space<smem>>
    %175 = vector.broadcast %174 : f32 to vector<8x128xf32>
    %176 = arith.subf %4, %175 : vector<8x128xf32>
    %c5_33 = arith.constant 5 : index
    %177 = memref.load %arg3[%c5_33] : memref<8xf32, #tpu.memory_space<smem>>
    %178 = vector.broadcast %177 : f32 to vector<8x128xf32>
    %179 = arith.subf %6, %178 : vector<8x128xf32>
    %c5_34 = arith.constant 5 : index
    %180 = memref.load %arg4[%c5_34] : memref<8xf32, #tpu.memory_space<smem>>
    %181 = vector.broadcast %180 : f32 to vector<8x128xf32>
    %182 = arith.subf %8, %181 : vector<8x128xf32>
    %183 = arith.mulf %176, %176 : vector<8x128xf32>
    %184 = arith.mulf %179, %179 : vector<8x128xf32>
    %185 = arith.addf %183, %184 : vector<8x128xf32>
    %186 = arith.mulf %182, %182 : vector<8x128xf32>
    %187 = arith.addf %185, %186 : vector<8x128xf32>
    %cst_35 = arith.constant 1.42108547E-14 : f32
    %188 = vector.broadcast %cst_35 : f32 to vector<8x128xf32>
    %189 = arith.maximumf %187, %188 : vector<8x128xf32>
    %190 = math.rsqrt %189 : vector<8x128xf32>
    %191 = vector.broadcast %173 : f32 to vector<8x128xf32>
    %192 = arith.mulf %191, %190 : vector<8x128xf32>
    %193 = arith.addf %161, %192 : vector<8x128xf32>
    %cst_36 = arith.constant 0.000000e+00 : f32
    %194 = arith.subf %cst_36, %173 : f32
    %195 = arith.mulf %190, %190 : vector<8x128xf32>
    %196 = arith.mulf %195, %190 : vector<8x128xf32>
    %197 = vector.broadcast %194 : f32 to vector<8x128xf32>
    %198 = arith.mulf %197, %196 : vector<8x128xf32>
    %199 = arith.mulf %198, %176 : vector<8x128xf32>
    %200 = arith.addf %168, %199 : vector<8x128xf32>
    %201 = arith.mulf %198, %179 : vector<8x128xf32>
    %202 = arith.addf %170, %201 : vector<8x128xf32>
    %203 = arith.mulf %198, %182 : vector<8x128xf32>
    %204 = arith.addf %172, %203 : vector<8x128xf32>
    %c6 = arith.constant 6 : index
    %205 = memref.load %arg1[%c6] : memref<8xf32, #tpu.memory_space<smem>>
    %c6_37 = arith.constant 6 : index
    %206 = memref.load %arg2[%c6_37] : memref<8xf32, #tpu.memory_space<smem>>
    %207 = vector.broadcast %206 : f32 to vector<8x128xf32>
    %208 = arith.subf %4, %207 : vector<8x128xf32>
    %c6_38 = arith.constant 6 : index
    %209 = memref.load %arg3[%c6_38] : memref<8xf32, #tpu.memory_space<smem>>
    %210 = vector.broadcast %209 : f32 to vector<8x128xf32>
    %211 = arith.subf %6, %210 : vector<8x128xf32>
    %c6_39 = arith.constant 6 : index
    %212 = memref.load %arg4[%c6_39] : memref<8xf32, #tpu.memory_space<smem>>
    %213 = vector.broadcast %212 : f32 to vector<8x128xf32>
    %214 = arith.subf %8, %213 : vector<8x128xf32>
    %215 = arith.mulf %208, %208 : vector<8x128xf32>
    %216 = arith.mulf %211, %211 : vector<8x128xf32>
    %217 = arith.addf %215, %216 : vector<8x128xf32>
    %218 = arith.mulf %214, %214 : vector<8x128xf32>
    %219 = arith.addf %217, %218 : vector<8x128xf32>
    %cst_40 = arith.constant 1.42108547E-14 : f32
    %220 = vector.broadcast %cst_40 : f32 to vector<8x128xf32>
    %221 = arith.maximumf %219, %220 : vector<8x128xf32>
    %222 = math.rsqrt %221 : vector<8x128xf32>
    %223 = vector.broadcast %205 : f32 to vector<8x128xf32>
    %224 = arith.mulf %223, %222 : vector<8x128xf32>
    %225 = arith.addf %193, %224 : vector<8x128xf32>
    %cst_41 = arith.constant 0.000000e+00 : f32
    %226 = arith.subf %cst_41, %205 : f32
    %227 = arith.mulf %222, %222 : vector<8x128xf32>
    %228 = arith.mulf %227, %222 : vector<8x128xf32>
    %229 = vector.broadcast %226 : f32 to vector<8x128xf32>
    %230 = arith.mulf %229, %228 : vector<8x128xf32>
    %231 = arith.mulf %230, %208 : vector<8x128xf32>
    %232 = arith.addf %200, %231 : vector<8x128xf32>
    %233 = arith.mulf %230, %211 : vector<8x128xf32>
    %234 = arith.addf %202, %233 : vector<8x128xf32>
    %235 = arith.mulf %230, %214 : vector<8x128xf32>
    %236 = arith.addf %204, %235 : vector<8x128xf32>
    %c7 = arith.constant 7 : index
    %237 = memref.load %arg1[%c7] : memref<8xf32, #tpu.memory_space<smem>>
    %c7_42 = arith.constant 7 : index
    %238 = memref.load %arg2[%c7_42] : memref<8xf32, #tpu.memory_space<smem>>
    %239 = vector.broadcast %238 : f32 to vector<8x128xf32>
    %240 = arith.subf %4, %239 : vector<8x128xf32>
    %c7_43 = arith.constant 7 : index
    %241 = memref.load %arg3[%c7_43] : memref<8xf32, #tpu.memory_space<smem>>
    %242 = vector.broadcast %241 : f32 to vector<8x128xf32>
    %243 = arith.subf %6, %242 : vector<8x128xf32>
    %c7_44 = arith.constant 7 : index
    %244 = memref.load %arg4[%c7_44] : memref<8xf32, #tpu.memory_space<smem>>
    %245 = vector.broadcast %244 : f32 to vector<8x128xf32>
    %246 = arith.subf %8, %245 : vector<8x128xf32>
    %247 = arith.mulf %240, %240 : vector<8x128xf32>
    %248 = arith.mulf %243, %243 : vector<8x128xf32>
    %249 = arith.addf %247, %248 : vector<8x128xf32>
    %250 = arith.mulf %246, %246 : vector<8x128xf32>
    %251 = arith.addf %249, %250 : vector<8x128xf32>
    %cst_45 = arith.constant 1.42108547E-14 : f32
    %252 = vector.broadcast %cst_45 : f32 to vector<8x128xf32>
    %253 = arith.maximumf %251, %252 : vector<8x128xf32>
    %254 = math.rsqrt %253 : vector<8x128xf32>
    %255 = vector.broadcast %237 : f32 to vector<8x128xf32>
    %256 = arith.mulf %255, %254 : vector<8x128xf32>
    %257 = arith.addf %225, %256 : vector<8x128xf32>
    %cst_46 = arith.constant 0.000000e+00 : f32
    %258 = arith.subf %cst_46, %237 : f32
    %259 = arith.mulf %254, %254 : vector<8x128xf32>
    %260 = arith.mulf %259, %254 : vector<8x128xf32>
    %261 = vector.broadcast %258 : f32 to vector<8x128xf32>
    %262 = arith.mulf %261, %260 : vector<8x128xf32>
    %263 = arith.mulf %262, %240 : vector<8x128xf32>
    %264 = arith.addf %232, %263 : vector<8x128xf32>
    %265 = arith.mulf %262, %243 : vector<8x128xf32>
    %266 = arith.addf %234, %265 : vector<8x128xf32>
    %267 = arith.mulf %262, %246 : vector<8x128xf32>
    %268 = arith.addf %236, %267 : vector<8x128xf32>
    %269 = arith.index_cast %2 : i32 to index
    %c0_47 = arith.constant 0 : index
    %270 = vector.load %arg11[%269, %c0_47] : memref<8x128xf32, #tpu.memory_space<vmem>>, vector<8x128xf32>
    %271 = arith.index_cast %2 : i32 to index
    %c0_48 = arith.constant 0 : index
    %272 = vector.load %arg8[%271, %c0_48] : memref<8x128xf32, #tpu.memory_space<vmem>>, vector<8x128xf32>
    %273 = arith.index_cast %2 : i32 to index
    %c0_49 = arith.constant 0 : index
    %274 = vector.load %arg9[%273, %c0_49] : memref<8x128xf32, #tpu.memory_space<vmem>>, vector<8x128xf32>
    %275 = arith.index_cast %2 : i32 to index
    %c0_50 = arith.constant 0 : index
    %276 = vector.load %arg10[%275, %c0_50] : memref<8x128xf32, #tpu.memory_space<vmem>>, vector<8x128xf32>
    %277 = arith.mulf %264, %272 : vector<8x128xf32>
    %278 = arith.mulf %266, %274 : vector<8x128xf32>
    %279 = arith.addf %277, %278 : vector<8x128xf32>
    %280 = arith.mulf %268, %276 : vector<8x128xf32>
    %281 = arith.addf %279, %280 : vector<8x128xf32>
    %cst_51 = arith.constant 1.000000e+00 : f32
    %282 = vector.broadcast %cst_51 : f32 to vector<8x128xf32>
    %283 = arith.mulf %282, %281 : vector<8x128xf32>
    %c0_52 = arith.constant 0 : index
    %c0_53 = arith.constant 0 : index
    %284 = arith.index_cast %2 : i32 to index
    %c0_54 = arith.constant 0 : index
    %285 = vector.load %arg12[%c0_52, %c0_53, %284, %c0_54] : memref<2x7x8x128xf32, #tpu.memory_space<vmem>>, vector<2x7x8x128xf32>
    %286 = vector.extract_strided_slice %285 {offsets = [0, 0, 0, 0], sizes = [2, 1, 8, 128], strides = [1, 1, 1, 1]} : vector<2x7x8x128xf32> to vector<2x1x8x128xf32>
    %287 = vector.shape_cast %286 : vector<2x1x8x128xf32> to vector<2x8x128xf32>
    %cst_55 = arith.constant 1.000000e+00 : f32
    %288 = vector.broadcast %cst_55 : f32 to vector<2x8x128xf32>
    %289 = arith.mulf %287, %288 : vector<2x8x128xf32>
    %290 = vector.shape_cast %257 : vector<8x128xf32> to vector<1x8x128xf32>
    %291 = vector.broadcast %290 : vector<1x8x128xf32> to vector<2x8x128xf32>
    %292 = arith.addf %289, %291 : vector<2x8x128xf32>
    %293 = arith.subf %292, %289 : vector<2x8x128xf32>
    %294 = vector.shape_cast %270 : vector<8x128xf32> to vector<1x8x128xf32>
    %295 = vector.broadcast %294 : vector<1x8x128xf32> to vector<2x8x128xf32>
    %296 = arith.mulf %293, %295 : vector<2x8x128xf32>
    %297 = arith.mulf %296, %296 : vector<2x8x128xf32>
    %cst_56 = arith.constant dense<0.000000e+00> : vector<8x128xf32>
    %298 = vector.multi_reduction <add>, %297, %cst_56 [0] : vector<2x8x128xf32> to vector<8x128xf32>
    %cst_57 = arith.constant dense<0.000000e+00> : vector<128xf32>
    %299 = vector.multi_reduction <add>, %298, %cst_57 [0] : vector<8x128xf32> to vector<128xf32>
    %300 = vector.shape_cast %299 : vector<128xf32> to vector<1x128xf32>
    %301 = arith.addf %0, %300 : vector<1x128xf32>
    %cst_58 = arith.constant 0.000000e+00 : f32
    %302 = vector.broadcast %cst_58 : f32 to vector<8x128xf32>
    %303 = arith.cmpf ogt, %272, %302 : vector<8x128xf32>
    %cst_59 = arith.constant 0.000000e+00 : f32
    %304 = vector.broadcast %cst_59 : f32 to vector<8x128xf32>
    %305 = arith.cmpf ogt, %274, %304 : vector<8x128xf32>
    %cst_60 = arith.constant 0.000000e+00 : f32
    %306 = vector.broadcast %cst_60 : f32 to vector<8x128xf32>
    %307 = arith.cmpf ogt, %276, %306 : vector<8x128xf32>
    %308 = vector.extract_strided_slice %285 {offsets = [0, 1, 0, 0], sizes = [2, 1, 8, 128], strides = [1, 1, 1, 1]} : vector<2x7x8x128xf32> to vector<2x1x8x128xf32>
    %309 = vector.shape_cast %308 : vector<2x1x8x128xf32> to vector<2x8x128xf32>
    %310 = arith.subf %287, %309 : vector<2x8x128xf32>
    %311 = vector.extract_strided_slice %285 {offsets = [0, 2, 0, 0], sizes = [2, 1, 8, 128], strides = [1, 1, 1, 1]} : vector<2x7x8x128xf32> to vector<2x1x8x128xf32>
    %312 = vector.shape_cast %311 : vector<2x1x8x128xf32> to vector<2x8x128xf32>
    %313 = arith.subf %312, %287 : vector<2x8x128xf32>
    %314 = vector.shape_cast %303 : vector<8x128xi1> to vector<1x8x128xi1>
    %315 = vector.broadcast %314 : vector<1x8x128xi1> to vector<2x8x128xi1>
    %316 = arith.select %315, %310, %313 : vector<2x8x128xi1>, vector<2x8x128xf32>
    %cst_61 = arith.constant 1.500000e+01 : f32
    %317 = vector.broadcast %cst_61 : f32 to vector<2x8x128xf32>
    %318 = arith.mulf %316, %317 : vector<2x8x128xf32>
    %319 = vector.shape_cast %303 : vector<8x128xi1> to vector<1x8x128xi1>
    %320 = vector.broadcast %319 : vector<1x8x128xi1> to vector<2x8x128xi1>
    %321 = arith.select %320, %313, %310 : vector<2x8x128xi1>, vector<2x8x128xf32>
    %cst_62 = arith.constant 1.500000e+01 : f32
    %322 = vector.broadcast %cst_62 : f32 to vector<2x8x128xf32>
    %323 = arith.mulf %321, %322 : vector<2x8x128xf32>
    %324 = vector.extract_strided_slice %285 {offsets = [0, 3, 0, 0], sizes = [2, 1, 8, 128], strides = [1, 1, 1, 1]} : vector<2x7x8x128xf32> to vector<2x1x8x128xf32>
    %325 = vector.shape_cast %324 : vector<2x1x8x128xf32> to vector<2x8x128xf32>
    %326 = arith.subf %287, %325 : vector<2x8x128xf32>
    %327 = vector.extract_strided_slice %285 {offsets = [0, 4, 0, 0], sizes = [2, 1, 8, 128], strides = [1, 1, 1, 1]} : vector<2x7x8x128xf32> to vector<2x1x8x128xf32>
    %328 = vector.shape_cast %327 : vector<2x1x8x128xf32> to vector<2x8x128xf32>
    %329 = arith.subf %328, %287 : vector<2x8x128xf32>
    %330 = vector.shape_cast %305 : vector<8x128xi1> to vector<1x8x128xi1>
    %331 = vector.broadcast %330 : vector<1x8x128xi1> to vector<2x8x128xi1>
    %332 = arith.select %331, %326, %329 : vector<2x8x128xi1>, vector<2x8x128xf32>
    %cst_63 = arith.constant 1.500000e+01 : f32
    %333 = vector.broadcast %cst_63 : f32 to vector<2x8x128xf32>
    %334 = arith.mulf %332, %333 : vector<2x8x128xf32>
    %335 = vector.shape_cast %305 : vector<8x128xi1> to vector<1x8x128xi1>
    %336 = vector.broadcast %335 : vector<1x8x128xi1> to vector<2x8x128xi1>
    %337 = arith.select %336, %329, %326 : vector<2x8x128xi1>, vector<2x8x128xf32>
    %cst_64 = arith.constant 1.500000e+01 : f32
    %338 = vector.broadcast %cst_64 : f32 to vector<2x8x128xf32>
    %339 = arith.mulf %337, %338 : vector<2x8x128xf32>
    %340 = vector.extract_strided_slice %285 {offsets = [0, 5, 0, 0], sizes = [2, 1, 8, 128], strides = [1, 1, 1, 1]} : vector<2x7x8x128xf32> to vector<2x1x8x128xf32>
    %341 = vector.shape_cast %340 : vector<2x1x8x128xf32> to vector<2x8x128xf32>
    %342 = arith.subf %287, %341 : vector<2x8x128xf32>
    %343 = vector.extract_strided_slice %285 {offsets = [0, 6, 0, 0], sizes = [2, 1, 8, 128], strides = [1, 1, 1, 1]} : vector<2x7x8x128xf32> to vector<2x1x8x128xf32>
    %344 = vector.shape_cast %343 : vector<2x1x8x128xf32> to vector<2x8x128xf32>
    %345 = arith.subf %344, %287 : vector<2x8x128xf32>
    %346 = vector.shape_cast %307 : vector<8x128xi1> to vector<1x8x128xi1>
    %347 = vector.broadcast %346 : vector<1x8x128xi1> to vector<2x8x128xi1>
    %348 = arith.select %347, %342, %345 : vector<2x8x128xi1>, vector<2x8x128xf32>
    %cst_65 = arith.constant 1.500000e+01 : f32
    %349 = vector.broadcast %cst_65 : f32 to vector<2x8x128xf32>
    %350 = arith.mulf %348, %349 : vector<2x8x128xf32>
    %351 = vector.shape_cast %307 : vector<8x128xi1> to vector<1x8x128xi1>
    %352 = vector.broadcast %351 : vector<1x8x128xi1> to vector<2x8x128xi1>
    %353 = arith.select %352, %345, %342 : vector<2x8x128xi1>, vector<2x8x128xf32>
    %cst_66 = arith.constant 1.500000e+01 : f32
    %354 = vector.broadcast %cst_66 : f32 to vector<2x8x128xf32>
    %355 = arith.mulf %353, %354 : vector<2x8x128xf32>
    %356 = vector.shape_cast %272 : vector<8x128xf32> to vector<1x8x128xf32>
    %357 = vector.broadcast %356 : vector<1x8x128xf32> to vector<2x8x128xf32>
    %358 = arith.mulf %318, %357 : vector<2x8x128xf32>
    %359 = vector.shape_cast %274 : vector<8x128xf32> to vector<1x8x128xf32>
    %360 = vector.broadcast %359 : vector<1x8x128xf32> to vector<2x8x128xf32>
    %361 = arith.mulf %334, %360 : vector<2x8x128xf32>
    %362 = arith.addf %358, %361 : vector<2x8x128xf32>
    %363 = vector.shape_cast %276 : vector<8x128xf32> to vector<1x8x128xf32>
    %364 = vector.broadcast %363 : vector<1x8x128xf32> to vector<2x8x128xf32>
    %365 = arith.mulf %350, %364 : vector<2x8x128xf32>
    %366 = arith.addf %362, %365 : vector<2x8x128xf32>
    %367 = vector.shape_cast %272 : vector<8x128xf32> to vector<1x8x128xf32>
    %368 = vector.broadcast %367 : vector<1x8x128xf32> to vector<2x8x128xf32>
    %369 = arith.mulf %323, %368 : vector<2x8x128xf32>
    %370 = vector.shape_cast %274 : vector<8x128xf32> to vector<1x8x128xf32>
    %371 = vector.broadcast %370 : vector<1x8x128xf32> to vector<2x8x128xf32>
    %372 = arith.mulf %339, %371 : vector<2x8x128xf32>
    %373 = arith.addf %369, %372 : vector<2x8x128xf32>
    %374 = vector.shape_cast %276 : vector<8x128xf32> to vector<1x8x128xf32>
    %375 = vector.broadcast %374 : vector<1x8x128xf32> to vector<2x8x128xf32>
    %376 = arith.mulf %355, %375 : vector<2x8x128xf32>
    %377 = arith.addf %373, %376 : vector<2x8x128xf32>
    %cst_67 = arith.constant 1.000000e+00 : f32
    %378 = vector.broadcast %cst_67 : f32 to vector<2x8x128xf32>
    %379 = arith.mulf %378, %366 : vector<2x8x128xf32>
    %380 = vector.shape_cast %283 : vector<8x128xf32> to vector<1x8x128xf32>
    %381 = vector.broadcast %380 : vector<1x8x128xf32> to vector<2x8x128xf32>
    %382 = arith.addf %379, %381 : vector<2x8x128xf32>
    %cst_68 = arith.constant 8.000000e+01 : f32
    %383 = vector.broadcast %cst_68 : f32 to vector<2x8x128xf32>
    %384 = arith.mulf %383, %377 : vector<2x8x128xf32>
    %385 = arith.subf %382, %384 : vector<2x8x128xf32>
    %386 = vector.shape_cast %270 : vector<8x128xf32> to vector<1x8x128xf32>
    %387 = vector.broadcast %386 : vector<1x8x128xf32> to vector<2x8x128xf32>
    %388 = arith.mulf %385, %387 : vector<2x8x128xf32>
    %389 = arith.mulf %388, %388 : vector<2x8x128xf32>
    %cst_69 = arith.constant dense<0.000000e+00> : vector<8x128xf32>
    %390 = vector.multi_reduction <add>, %389, %cst_69 [0] : vector<2x8x128xf32> to vector<8x128xf32>
    %cst_70 = arith.constant dense<0.000000e+00> : vector<128xf32>
    %391 = vector.multi_reduction <add>, %390, %cst_70 [0] : vector<8x128xf32> to vector<128xf32>
    %392 = vector.shape_cast %391 : vector<128xf32> to vector<1x128xf32>
    %393 = arith.addf %0, %392 : vector<1x128xf32>
    %c1_i32 = arith.constant 1 : i32
    %394 = tpu.concatenate %301, %393 in 0 : vector<1x128xf32>, vector<1x128xf32> -> vector<2x128xf32>
    %c0_71 = arith.constant 0 : index
    %c0_72 = arith.constant 0 : index
    %c0_73 = arith.constant 0 : index
    %395 = vector.load %arg13[%c0_71, %c0_72, %c0_73] : memref<1x2x128xf32, #tpu.memory_space<vmem>>, vector<1x2x128xf32>
    %396 = vector.shape_cast %395 : vector<1x2x128xf32> to vector<2x128xf32>
    %397 = vector.shape_cast %394 : vector<2x128xf32> to vector<1x2x128xf32>
    tpu.vector_store %arg13[%c0_71, %c0_72, %c0_73], %397 {strides = array<i32>} : memref<1x2x128xf32, #tpu.memory_space<vmem>>, vector<1x2x128xf32>,
    return
  }
  func.func @transform_0(%arg0: i32) -> i32 {
    %c0_i32 = arith.constant 0 : i32
    %c0_i32_0 = arith.constant 0 : i32
    return %c0_i32 : i32
  }
  func.func @transform_1(%arg0: i32) -> i32 {
    %c0_i32 = arith.constant 0 : i32
    %c0_i32_0 = arith.constant 0 : i32
    return %c0_i32 : i32
  }
  func.func @transform_2(%arg0: i32) -> i32 {
    %c0_i32 = arith.constant 0 : i32
    %c0_i32_0 = arith.constant 0 : i32
    return %c0_i32 : i32
  }
  func.func @transform_3(%arg0: i32) -> i32 {
    %c0_i32 = arith.constant 0 : i32
    %c0_i32_0 = arith.constant 0 : i32
    return %c0_i32 : i32
  }
  func.func @transform_4(%arg0: i32) -> (i32, i32) {
    %c0_i32 = arith.constant 0 : i32
    %c0_i32_0 = arith.constant 0 : i32
    return %arg0, %c0_i32 : i32, i32
  }
  func.func @transform_5(%arg0: i32) -> (i32, i32) {
    %c0_i32 = arith.constant 0 : i32
    %c0_i32_0 = arith.constant 0 : i32
    return %arg0, %c0_i32 : i32, i32
  }
  func.func @transform_6(%arg0: i32) -> (i32, i32) {
    %c0_i32 = arith.constant 0 : i32
    %c0_i32_0 = arith.constant 0 : i32
    return %arg0, %c0_i32 : i32, i32
  }
  func.func @transform_7(%arg0: i32) -> (i32, i32) {
    %c0_i32 = arith.constant 0 : i32
    %c0_i32_0 = arith.constant 0 : i32
    return %arg0, %c0_i32 : i32, i32
  }
  func.func @transform_8(%arg0: i32) -> (i32, i32) {
    %c0_i32 = arith.constant 0 : i32
    %c0_i32_0 = arith.constant 0 : i32
    return %arg0, %c0_i32 : i32, i32
  }
  func.func @transform_9(%arg0: i32) -> (i32, i32) {
    %c0_i32 = arith.constant 0 : i32
    %c0_i32_0 = arith.constant 0 : i32
    return %arg0, %c0_i32 : i32, i32
  }
  func.func @transform_10(%arg0: i32) -> (i32, i32) {
    %c0_i32 = arith.constant 0 : i32
    %c0_i32_0 = arith.constant 0 : i32
    return %arg0, %c0_i32 : i32, i32
  }
  func.func @transform_11(%arg0: i32) -> (i32, i32, i32, i32) {
    %c0_i32 = arith.constant 0 : i32
    %c0_i32_0 = arith.constant 0 : i32
    %c0_i32_1 = arith.constant 0 : i32
    %c0_i32_2 = arith.constant 0 : i32
    return %c0_i32, %c0_i32_0, %arg0, %c0_i32_1 : i32, i32, i32, i32
  }
  func.func @transform_12(%arg0: i32) -> (i32, i32, i32) {
    %c0_i32 = arith.constant 0 : i32
    %c0_i32_0 = arith.constant 0 : i32
    %c0_i32_1 = arith.constant 0 : i32
    return %arg0, %c0_i32, %c0_i32_0 : i32, i32, i32
  }
}

</mosaic_0001>

<llo_original>
// kernel: tpu_custom_call.1
$region0: #{tpu_custom_call.1}
  #allocation0 [shape = 'u32[]', space=smem, size = 0x4, offset = 0x4, fixed_abs, tag = 'smem constant byte address 0x4 - core index']
  #allocation1 [shape = 'u32[144,128]{1,0:T(1,128)}', space=vmem, size = 0x12000, scoped, tag = 'internal scratch']
  %s0 = inlined_call_operand.hbm [shape: f32[8], index: 0, kind: input, shape index: {}]
  %s1 = inlined_call_operand.hbm [shape: f32[8], index: 1, kind: input, shape index: {}]
  %s2 = inlined_call_operand.hbm [shape: f32[8], index: 2, kind: input, shape index: {}]
  %s3 = inlined_call_operand.hbm [shape: f32[8], index: 3, kind: input, shape index: {}]
  %s4 = inlined_call_operand.hbm [shape: f32[8,128], index: 4, kind: input, shape index: {}]
  %s5 = inlined_call_operand.vmem [shape: f32[8,128], index: 5, kind: input, shape index: {}]
  %s6 = inlined_call_operand.hbm [shape: f32[8,128], index: 6, kind: input, shape index: {}]
  %s7 = inlined_call_operand.hbm [shape: f32[8,128], index: 7, kind: input, shape index: {}]
  %s8 = inlined_call_operand.hbm [shape: f32[8,128], index: 8, kind: input, shape index: {}]
  %s9 = inlined_call_operand.vmem [shape: f32[8,128], index: 9, kind: input, shape index: {}]
  %s10 = inlined_call_operand.hbm [shape: f32[8,128], index: 10, kind: input, shape index: {}]
  %s11 = inlined_call_operand.hbm [shape: f32[2,7,8,128], index: 11, kind: input, shape index: {}]
  %s12 = inlined_call_operand.hbm [shape: f32[1,2,128], index: 12, kind: output, shape index: {}]
  %s13 = sld [smem:[#allocation0]]
  $region98: #{tpu_custom_call.1} parent=0
    _
  %s15 = ssub.s32 1, %s13
  %s16 = scalar_select 0, %s15, %s13
  $region1: #{tpu_custom_call.1} parent=0
    #allocation2 [shape = 'u8[512]{0}', space=smem, size = 0x200, scoped, tag = 'input window, operand 0, single buffered']
    #allocation3 [shape = 's32[1]{0}', space=sflag, size = 0x4, scoped, tag = 'scoped memory for tpu_custom_call.1']
    #allocation4 [shape = 's32[1]{0}', space=sflag, size = 0x4, scoped, tag = 'scoped memory for tpu_custom_call.1']
    #allocation5 [shape = 's32[1]{0}', space=sflag, size = 0x4, scoped, tag = 'scoped memory for tpu_custom_call.1']
    #allocation6 [shape = 'u8[512]{0}', space=smem, size = 0x200, scoped, tag = 'input window, operand 1, single buffered']
    #allocation7 [shape = 's32[1]{0}', space=sflag, size = 0x4, scoped, tag = 'scoped memory for tpu_custom_call.1']
    #allocation8 [shape = 'u8[512]{0}', space=smem, size = 0x200, scoped, tag = 'input window, operand 2, single buffered']
    #allocation9 [shape = 'u8[512]{0}', space=smem, size = 0x200, scoped, tag = 'input window, operand 3, single buffered']
    #allocation10 [shape = 's32[1]{0}', space=sflag, size = 0x4, scoped, tag = 'scoped memory for tpu_custom_call.1']
    #allocation11 [shape = 'u8[4096]{0}', space=vmem, size = 0x1000, scoped, tag = 'input window, operand 4, single buffered']
    #allocation12 [shape = 'u8[4096]{0}', space=vmem, size = 0x1000, scoped, tag = 'input window, operand 6, single buffered']
    #allocation13 [shape = 's32[1]{0}', space=sflag, size = 0x4, scoped, tag = 'scoped memory for tpu_custom_call.1']
    #allocation14 [shape = 'u8[4096]{0}', space=vmem, size = 0x1000, scoped, tag = 'input window, operand 7, single buffered']
    #allocation15 [shape = 'u8[4096]{0}', space=vmem, size = 0x1000, scoped, tag = 'input window, operand 8, single buffered']
    #allocation16 [shape = 's32[1]{0}', space=sflag, size = 0x4, scoped, tag = 'scoped memory for tpu_custom_call.1']
    #allocation17 [shape = 'u8[4096]{0}', space=vmem, size = 0x1000, scoped, tag = 'input window, operand 10, single buffered']
    #allocation18 [shape = 'u8[57344]{0}', space=vmem, size = 0xe000, scoped, tag = 'input window, operand 11, single buffered']
    #allocation19 [shape = 's32[1]{0}', space=sflag, size = 0x4, scoped, tag = 'scoped memory for tpu_custom_call.1']
    #allocation20 [shape = 'u8[1024]{0}', space=vmem, size = 0x400, scoped, tag = 'output window, operand 0, single buffered']
    %17 = vsyncpa [#allocation5], 0
    %18 = vsyncpa [#allocation7], 0
    %19 = vsyncpa [#allocation10], 0
    %20 = vsyncpa [#allocation3], 0
    %21 = vsyncpa [#allocation13], 0
    %22 = vsyncpa [#allocation16], 0
    %23 = vsyncpa [#allocation19], 0
    %24 = vsyncpa [#allocation4], 0
    // Predicated region
    $region2: #{tpu_custom_call.1} parent=1 // pred_check
      _
    $region3: #{tpu_custom_call.1} parent=1 // pred_check_branch
      %26 = sbr.rel (0) target = $region5
    $region4: #{tpu_custom_call.1} parent=1 // pred_region
      %s28 = ssub.s32 16, 16
      %29 = vsyncadd [#allocation5], %s28
      %32 = dma.hbm_to_smem %s0, 16, [#allocation2], [#allocation5]
    $region5: #{tpu_custom_call.1} parent=1 // pred_fallthru
      _
    // Predicated region
    $region6: #{tpu_custom_call.1} parent=1 // pred_check
      _
    $region7: #{tpu_custom_call.1} parent=1 // pred_check_branch
      %34 = sbr.rel (0) target = $region9
    $region8: #{tpu_custom_call.1} parent=1 // pred_region
      %s36 = ssub.s32 16, 16
      %37 = vsyncadd [#allocation7], %s36
      %40 = dma.hbm_to_smem %s1, 16, [#allocation6], [#allocation7]
    $region9: #{tpu_custom_call.1} parent=1 // pred_fallthru
      _
    // Predicated region
    $region10: #{tpu_custom_call.1} parent=1 // pred_check
      _
    $region11: #{tpu_custom_call.1} parent=1 // pred_check_branch
      %42 = sbr.rel (0) target = $region13
    $region12: #{tpu_custom_call.1} parent=1 // pred_region
      %s44 = ssub.s32 16, 16
      %45 = vsyncadd [#allocation7], %s44
      %48 = dma.hbm_to_smem %s2, 16, [#allocation8], [#allocation7]
    $region13: #{tpu_custom_call.1} parent=1 // pred_fallthru
      _
    // Predicated region
    $region14: #{tpu_custom_call.1} parent=1 // pred_check
      _
    $region15: #{tpu_custom_call.1} parent=1 // pred_check_branch
      %50 = sbr.rel (0) target = $region17
    $region16: #{tpu_custom_call.1} parent=1 // pred_region
      %s52 = ssub.s32 16, 16
      %53 = vsyncadd [#allocation10], %s52
      %56 = dma.hbm_to_smem %s3, 16, [#allocation9], [#allocation10]
    $region17: #{tpu_custom_call.1} parent=1 // pred_fallthru
      _
    // Predicated region
    $region18: #{tpu_custom_call.1} parent=1 // pred_check
      _
    $region19: #{tpu_custom_call.1} parent=1 // pred_check_branch
      %58 = sbr.rel (0) target = $region21
    $region20: #{tpu_custom_call.1} parent=1 // pred_region
      %s60 = ssub.s32 128, 128
      %61 = vsyncadd [#allocation3], %s60
      %s63 = sshll.u32 [#allocation11], 4
      %s64 = int_to_ptr.vmem [resolvable:$true] %s63
      %66 = dma.hbm_to_vmem [thread:$0]  %s4, 128, %s64, [#allocation3]
    $region21: #{tpu_custom_call.1} parent=1 // pred_fallthru
      _
    // Predicated region
    $region22: #{tpu_custom_call.1} parent=1 // pred_check
      _
    $region23: #{tpu_custom_call.1} parent=1 // pred_check_branch
      %68 = sbr.rel (0) target = $region25
    $region24: #{tpu_custom_call.1} parent=1 // pred_region
      _
    $region25: #{tpu_custom_call.1} parent=1 // pred_fallthru
      _
    // Predicated region
    $region26: #{tpu_custom_call.1} parent=1 // pred_check
      _
    $region27: #{tpu_custom_call.1} parent=1 // pred_check_branch
      %70 = sbr.rel (0) target = $region29
    $region28: #{tpu_custom_call.1} parent=1 // pred_region
      %s72 = ssub.s32 128, 128
      %73 = vsyncadd [#allocation13], %s72
      %s75 = sshll.u32 [#allocation12], 4
      %s76 = int_to_ptr.vmem [resolvable:$true] %s75
      %78 = dma.hbm_to_vmem [thread:$0]  %s6, 128, %s76, [#allocation13]
    $region29: #{tpu_custom_call.1} parent=1 // pred_fallthru
      _
    // Predicated region
    $region30: #{tpu_custom_call.1} parent=1 // pred_check
      _
    $region31: #{tpu_custom_call.1} parent=1 // pred_check_branch
      %80 = sbr.rel (0) target = $region33
    $region32: #{tpu_custom_call.1} parent=1 // pred_region
      %s82 = ssub.s32 128, 128
      %83 = vsyncadd [#allocation13], %s82
      %s85 = sshll.u32 [#allocation14], 4
      %s86 = int_to_ptr.vmem [resolvable:$true] %s85
      %88 = dma.hbm_to_vmem [thread:$0]  %s7, 128, %s86, [#allocation13]
    $region33: #{tpu_custom_call.1} parent=1 // pred_fallthru
      _
    // Predicated region
    $region34: #{tpu_custom_call.1} parent=1 // pred_check
      _
    $region35: #{tpu_custom_call.1} parent=1 // pred_check_branch
      %90 = sbr.rel (0) target = $region37
    $region36: #{tpu_custom_call.1} parent=1 // pred_region
      %s92 = ssub.s32 128, 128
      %93 = vsyncadd [#allocation16], %s92
      %s95 = sshll.u32 [#allocation15], 4
      %s96 = int_to_ptr.vmem [resolvable:$true] %s95
      %98 = dma.hbm_to_vmem [thread:$0]  %s8, 128, %s96, [#allocation16]
    $region37: #{tpu_custom_call.1} parent=1 // pred_fallthru
      _
    // Predicated region
    $region38: #{tpu_custom_call.1} parent=1 // pred_check
      _
    $region39: #{tpu_custom_call.1} parent=1 // pred_check_branch
      %100 = sbr.rel (0) target = $region41
    $region40: #{tpu_custom_call.1} parent=1 // pred_region
      _
    $region41: #{tpu_custom_call.1} parent=1 // pred_fallthru
      _
    // Predicated region
    $region42: #{tpu_custom_call.1} parent=1 // pred_check
      _
    $region43: #{tpu_custom_call.1} parent=1 // pred_check_branch
      %102 = sbr.rel (0) target = $region45
    $region44: #{tpu_custom_call.1} parent=1 // pred_region
      %s104 = ssub.s32 128, 128
      %105 = vsyncadd [#allocation16], %s104
      %s107 = sshll.u32 [#allocation17], 4
      %s108 = int_to_ptr.vmem [resolvable:$true] %s107
      %110 = dma.hbm_to_vmem [thread:$0]  %s10, 128, %s108, [#allocation16]
    $region45: #{tpu_custom_call.1} parent=1 // pred_fallthru
      _
    // Predicated region
    $region46: #{tpu_custom_call.1} parent=1 // pred_check
      _
    $region47: #{tpu_custom_call.1} parent=1 // pred_check_branch
      %112 = sbr.rel (0) target = $region49
    $region48: #{tpu_custom_call.1} parent=1 // pred_region
      %s114 = ssub.s32 1792, 1792
      %115 = vsyncadd [#allocation19], %s114
      %s116 = sshll.u32 [#allocation18], 4
      %s117 = int_to_ptr.vmem [resolvable:$true] %s116
      %122 = dma.hbm_to_vmem [thread:$0]  %s11, 1792, %s117, [#allocation19], 128, 128, 8
    $region49: #{tpu_custom_call.1} parent=1 // pred_fallthru
      _
    // Predicated region
    $region50: #{tpu_custom_call.1} parent=1 // pred_check
      _
    $region51: #{tpu_custom_call.1} parent=1 // pred_check_branch
      %124 = sbr.rel (0) target = $region53
    $region52: #{tpu_custom_call.1} parent=1 // pred_region
      %125 = dma.done [#allocation5], 16
    $region53: #{tpu_custom_call.1} parent=1 // pred_fallthru
      _
    // Predicated region
    $region54: #{tpu_custom_call.1} parent=1 // pred_check
      _
    $region55: #{tpu_custom_call.1} parent=1 // pred_check_branch
      %127 = sbr.rel (0) target = $region57
    $region56: #{tpu_custom_call.1} parent=1 // pred_region
      %128 = dma.done [#allocation7], 16
    $region57: #{tpu_custom_call.1} parent=1 // pred_fallthru
      _
    // Predicated region
    $region58: #{tpu_custom_call.1} parent=1 // pred_check
      _
    $region59: #{tpu_custom_call.1} parent=1 // pred_check_branch
      %130 = sbr.rel (0) target = $region61
    $region60: #{tpu_custom_call.1} parent=1 // pred_region
      %131 = dma.done [#allocation7], 16
    $region61: #{tpu_custom_call.1} parent=1 // pred_fallthru
      _
    // Predicated region
    $region62: #{tpu_custom_call.1} parent=1 // pred_check
      _
    $region63: #{tpu_custom_call.1} parent=1 // pred_check_branch
      %133 = sbr.rel (0) target = $region65
    $region64: #{tpu_custom_call.1} parent=1 // pred_region
      %134 = dma.done [#allocation10], 16
    $region65: #{tpu_custom_call.1} parent=1 // pred_fallthru
      _
    // Predicated region
    $region66: #{tpu_custom_call.1} parent=1 // pred_check
      _
    $region67: #{tpu_custom_call.1} parent=1 // pred_check_branch
      %136 = sbr.rel (0) target = $region69
    $region68: #{tpu_custom_call.1} parent=1 // pred_region
      %137 = dma.done [#allocation3], 128
    $region69: #{tpu_custom_call.1} parent=1 // pred_fallthru
      _
    // Predicated region
    $region70: #{tpu_custom_call.1} parent=1 // pred_check
      _
    $region71: #{tpu_custom_call.1} parent=1 // pred_check_branch
      %139 = sbr.rel (0) target = $region73
    $region72: #{tpu_custom_call.1} parent=1 // pred_region
      %140 = dma.done [#allocation13], 128
    $region73: #{tpu_custom_call.1} parent=1 // pred_fallthru
      _
    // Predicated region
    $region74: #{tpu_custom_call.1} parent=1 // pred_check
      _
    $region75: #{tpu_custom_call.1} parent=1 // pred_check_branch
      %142 = sbr.rel (0) target = $region77
    $region76: #{tpu_custom_call.1} parent=1 // pred_region
      %143 = dma.done [#allocation13], 128
    $region77: #{tpu_custom_call.1} parent=1 // pred_fallthru
      _
    // Predicated region
    $region78: #{tpu_custom_call.1} parent=1 // pred_check
      _
    $region79: #{tpu_custom_call.1} parent=1 // pred_check_branch
      %145 = sbr.rel (0) target = $region81
    $region80: #{tpu_custom_call.1} parent=1 // pred_region
      %146 = dma.done [#allocation16], 128
    $region81: #{tpu_custom_call.1} parent=1 // pred_fallthru
      _
    // Predicated region
    $region82: #{tpu_custom_call.1} parent=1 // pred_check
      _
    $region83: #{tpu_custom_call.1} parent=1 // pred_check_branch
      %148 = sbr.rel (0) target = $region85
    $region84: #{tpu_custom_call.1} parent=1 // pred_region
      %149 = dma.done [#allocation16], 128
    $region85: #{tpu_custom_call.1} parent=1 // pred_fallthru
      _
    // Predicated region
    $region86: #{tpu_custom_call.1} parent=1 // pred_check
      _
    $region87: #{tpu_custom_call.1} parent=1 // pred_check_branch
      %151 = sbr.rel (0) target = $region89
    $region88: #{tpu_custom_call.1} parent=1 // pred_region
      %152 = dma.done [#allocation19], 1792
    $region89: #{tpu_custom_call.1} parent=1 // pred_fallthru
      _
    %153 = sfence
    %v154 = vld [vmem:[#allocation11] sm:$0xff]
    %v155 = vld [vmem:[%s5] sm:$0xff]
    %v156 = vld [vmem:[#allocation12] sm:$0xff]
    %s157 = sld [smem:[#allocation2]]
    %s158 = sld [smem:[#allocation6]]
    %v159 = vstv %s158
    %v160 = vsub.f32 %v154, %v159
    %s161 = sld [smem:[#allocation8]]
    %v162 = vstv %s161
    %v163 = vsub.f32 %v155, %v162
    %s164 = sld [smem:[#allocation9]]
    %v165 = vstv %s164
    %v166 = vsub.f32 %v156, %v165
    %v167 = vmul.f32 %v160, %v160
    %v168 = vmul.f32 %v163, %v163
    %v169 = vadd.f32 %v167, %v168
    %v170 = vmul.f32 %v166, %v166
    %v171 = vadd.f32 %v169, %v170
    %v172 = vmax.f32 %v171, 1.4210855e-14
    %v173 = vrsqrt.pop %v172
    %v174 = vstv %s157
    %v175 = vmul.f32 %v174, %v173
    %v176 = vadd.f32 %v175, 0.0
    %s177 = ssub.f32 0.0, %s157
    %v178 = vmul.f32 %v173, %v173
    %v179 = vmul.f32 %v178, %v173
    %v180 = vstv %s177
    %v181 = vmul.f32 %v180, %v179
    %v182 = vmul.f32 %v181, %v160
    %v183 = vadd.f32 %v182, 0.0
    %v184 = vmul.f32 %v181, %v163
    %v185 = vadd.f32 %v184, 0.0
    %v186 = vmul.f32 %v181, %v166
    %v187 = vadd.f32 %v186, 0.0
    %s188 = sld [smem:[#allocation2 + $0x1]]
    %s189 = sld [smem:[#allocation6 + $0x1]]
    %v190 = vstv %s189
    %v191 = vsub.f32 %v154, %v190
    %s192 = sld [smem:[#allocation8 + $0x1]]
    %v193 = vstv %s192
    %v194 = vsub.f32 %v155, %v193
    %s195 = sld [smem:[#allocation9 + $0x1]]
    %v196 = vstv %s195
    %v197 = vsub.f32 %v156, %v196
    %v198 = vmul.f32 %v191, %v191
    %v199 = vmul.f32 %v194, %v194
    %v200 = vadd.f32 %v198, %v199
    %v201 = vmul.f32 %v197, %v197
    %v202 = vadd.f32 %v200, %v201
    %v203 = vmax.f32 %v202, 1.4210855e-14
    %v204 = vrsqrt.pop %v203
    %v205 = vstv %s188
    %v206 = vmul.f32 %v205, %v204
    %v207 = vadd.f32 %v176, %v206
    %s208 = ssub.f32 0.0, %s188
    %v209 = vmul.f32 %v204, %v204
    %v210 = vmul.f32 %v209, %v204
    %v211 = vstv %s208
    %v212 = vmul.f32 %v211, %v210
    %v213 = vmul.f32 %v212, %v191
    %v214 = vadd.f32 %v183, %v213
    %v215 = vmul.f32 %v212, %v194
    %v216 = vadd.f32 %v185, %v215
    %v217 = vmul.f32 %v212, %v197
    %v218 = vadd.f32 %v187, %v217
    %s219 = sld [smem:[#allocation2 + $0x2]]
    %s220 = sld [smem:[#allocation6 + $0x2]]
    %v221 = vstv %s220
    %v222 = vsub.f32 %v154, %v221
    %s223 = sld [smem:[#allocation8 + $0x2]]
    %v224 = vstv %s223
    %v225 = vsub.f32 %v155, %v224
    %s226 = sld [smem:[#allocation9 + $0x2]]
    %v227 = vstv %s226
    %v228 = vsub.f32 %v156, %v227
    %v229 = vmul.f32 %v222, %v222
    %v230 = vmul.f32 %v225, %v225
    %v231 = vadd.f32 %v229, %v230
    %v232 = vmul.f32 %v228, %v228
    %v233 = vadd.f32 %v231, %v232
    %v234 = vmax.f32 %v233, 1.4210855e-14
    %v235 = vrsqrt.pop %v234
    %v236 = vstv %s219
    %v237 = vmul.f32 %v236, %v235
    %v238 = vadd.f32 %v207, %v237
    %s239 = ssub.f32 0.0, %s219
    %v240 = vmul.f32 %v235, %v235
    %v241 = vmul.f32 %v240, %v235
    %v242 = vstv %s239
    %v243 = vmul.f32 %v242, %v241
    %v244 = vmul.f32 %v243, %v222
    %v245 = vadd.f32 %v214, %v244
    %v246 = vmul.f32 %v243, %v225
    %v247 = vadd.f32 %v216, %v246
    %v248 = vmul.f32 %v243, %v228
    %v249 = vadd.f32 %v218, %v248
    %s250 = sld [smem:[#allocation2 + $0x3]]
    %s251 = sld [smem:[#allocation6 + $0x3]]
    %v252 = vstv %s251
    %v253 = vsub.f32 %v154, %v252
    %s254 = sld [smem:[#allocation8 + $0x3]]
    %v255 = vstv %s254
    %v256 = vsub.f32 %v155, %v255
    %s257 = sld [smem:[#allocation9 + $0x3]]
    %v258 = vstv %s257
    %v259 = vsub.f32 %v156, %v258
    %v260 = vmul.f32 %v253, %v253
    %v261 = vmul.f32 %v256, %v256
    %v262 = vadd.f32 %v260, %v261
    %v263 = vmul.f32 %v259, %v259
    %v264 = vadd.f32 %v262, %v263
    %v265 = vmax.f32 %v264, 1.4210855e-14
    %v266 = vrsqrt.pop %v265
    %v267 = vstv %s250
    %v268 = vmul.f32 %v267, %v266
    %v269 = vadd.f32 %v238, %v268
    %s270 = ssub.f32 0.0, %s250
    %v271 = vmul.f32 %v266, %v266
    %v272 = vmul.f32 %v271, %v266
    %v273 = vstv %s270
    %v274 = vmul.f32 %v273, %v272
    %v275 = vmul.f32 %v274, %v253
    %v276 = vadd.f32 %v245, %v275
    %v277 = vmul.f32 %v274, %v256
    %v278 = vadd.f32 %v247, %v277
    %v279 = vmul.f32 %v274, %v259
    %v280 = vadd.f32 %v249, %v279
    %s281 = sld [smem:[#allocation2 + $0x4]]
    %s282 = sld [smem:[#allocation6 + $0x4]]
    %v283 = vstv %s282
    %v284 = vsub.f32 %v154, %v283
    %s285 = sld [smem:[#allocation8 + $0x4]]
    %v286 = vstv %s285
    %v287 = vsub.f32 %v155, %v286
    %s288 = sld [smem:[#allocation9 + $0x4]]
    %v289 = vstv %s288
    %v290 = vsub.f32 %v156, %v289
    %v291 = vmul.f32 %v284, %v284
    %v292 = vmul.f32 %v287, %v287
    %v293 = vadd.f32 %v291, %v292
    %v294 = vmul.f32 %v290, %v290
    %v295 = vadd.f32 %v293, %v294
    %v296 = vmax.f32 %v295, 1.4210855e-14
    %v297 = vrsqrt.pop %v296
    %v298 = vstv %s281
    %v299 = vmul.f32 %v298, %v297
    %v300 = vadd.f32 %v269, %v299
    %s301 = ssub.f32 0.0, %s281
    %v302 = vmul.f32 %v297, %v297
    %v303 = vmul.f32 %v302, %v297
    %v304 = vstv %s301
    %v305 = vmul.f32 %v304, %v303
    %v306 = vmul.f32 %v305, %v284
    %v307 = vadd.f32 %v276, %v306
    %v308 = vmul.f32 %v305, %v287
    %v309 = vadd.f32 %v278, %v308
    %v310 = vmul.f32 %v305, %v290
    %v311 = vadd.f32 %v280, %v310
    %s312 = sld [smem:[#allocation2 + $0x5]]
    %s313 = sld [smem:[#allocation6 + $0x5]]
    %v314 = vstv %s313
    %v315 = vsub.f32 %v154, %v314
    %s316 = sld [smem:[#allocation8 + $0x5]]
    %v317 = vstv %s316
    %v318 = vsub.f32 %v155, %v317
    %s319 = sld [smem:[#allocation9 + $0x5]]
    %v320 = vstv %s319
    %v321 = vsub.f32 %v156, %v320
    %v322 = vmul.f32 %v315, %v315
    %v323 = vmul.f32 %v318, %v318
    %v324 = vadd.f32 %v322, %v323
    %v325 = vmul.f32 %v321, %v321
    %v326 = vadd.f32 %v324, %v325
    %v327 = vmax.f32 %v326, 1.4210855e-14
    %v328 = vrsqrt.pop %v327
    %v329 = vstv %s312
    %v330 = vmul.f32 %v329, %v328
    %v331 = vadd.f32 %v300, %v330
    %s332 = ssub.f32 0.0, %s312
    %v333 = vmul.f32 %v328, %v328
    %v334 = vmul.f32 %v333, %v328
    %v335 = vstv %s332
    %v336 = vmul.f32 %v335, %v334
    %v337 = vmul.f32 %v336, %v315
    %v338 = vadd.f32 %v307, %v337
    %v339 = vmul.f32 %v336, %v318
    %v340 = vadd.f32 %v309, %v339
    %v341 = vmul.f32 %v336, %v321
    %v342 = vadd.f32 %v311, %v341
    %s343 = sld [smem:[#allocation2 + $0x6]]
    %s344 = sld [smem:[#allocation6 + $0x6]]
    %v345 = vstv %s344
    %v346 = vsub.f32 %v154, %v345
    %s347 = sld [smem:[#allocation8 + $0x6]]
    %v348 = vstv %s347
    %v349 = vsub.f32 %v155, %v348
    %s350 = sld [smem:[#allocation9 + $0x6]]
    %v351 = vstv %s350
    %v352 = vsub.f32 %v156, %v351
    %v353 = vmul.f32 %v346, %v346
    %v354 = vmul.f32 %v349, %v349
    %v355 = vadd.f32 %v353, %v354
    %v356 = vmul.f32 %v352, %v352
    %v357 = vadd.f32 %v355, %v356
    %v358 = vmax.f32 %v357, 1.4210855e-14
    %v359 = vrsqrt.pop %v358
    %v360 = vstv %s343
    %v361 = vmul.f32 %v360, %v359
    %v362 = vadd.f32 %v331, %v361
    %s363 = ssub.f32 0.0, %s343
    %v364 = vmul.f32 %v359, %v359
    %v365 = vmul.f32 %v364, %v359
    %v366 = vstv %s363
    %v367 = vmul.f32 %v366, %v365
    %v368 = vmul.f32 %v367, %v346
    %v369 = vadd.f32 %v338, %v368
    %v370 = vmul.f32 %v367, %v349
    %v371 = vadd.f32 %v340, %v370
    %v372 = vmul.f32 %v367, %v352
    %v373 = vadd.f32 %v342, %v372
    %s374 = sld [smem:[#allocation2 + $0x7]]
    %s375 = sld [smem:[#allocation6 + $0x7]]
    %v376 = vstv %s375
    %v377 = vsub.f32 %v154, %v376
    %s378 = sld [smem:[#allocation8 + $0x7]]
    %v379 = vstv %s378
    %v380 = vsub.f32 %v155, %v379
    %s381 = sld [smem:[#allocation9 + $0x7]]
    %v382 = vstv %s381
    %v383 = vsub.f32 %v156, %v382
    %v384 = vmul.f32 %v377, %v377
    %v385 = vmul.f32 %v380, %v380
    %v386 = vadd.f32 %v384, %v385
    %v387 = vmul.f32 %v383, %v383
    %v388 = vadd.f32 %v386, %v387
    %v389 = vmax.f32 %v388, 1.4210855e-14
    %v390 = vrsqrt.pop %v389
    %v391 = vstv %s374
    %v392 = vmul.f32 %v391, %v390
    %v393 = vadd.f32 %v362, %v392
    %s394 = ssub.f32 0.0, %s374
    %v395 = vmul.f32 %v390, %v390
    %v396 = vmul.f32 %v395, %v390
    %v397 = vstv %s394
    %v398 = vmul.f32 %v397, %v396
    %v399 = vmul.f32 %v398, %v377
    %v400 = vadd.f32 %v369, %v399
    %v401 = vmul.f32 %v398, %v380
    %v402 = vadd.f32 %v371, %v401
    %v403 = vmul.f32 %v398, %v383
    %v404 = vadd.f32 %v373, %v403
    %v405 = vld [vmem:[#allocation17] sm:$0xff]
    %v406 = vld [vmem:[#allocation14] sm:$0xff]
    %v407 = vld [vmem:[#allocation15] sm:$0xff]
    %v408 = vld [vmem:[%s9] sm:$0xff]
    %v409 = vmul.f32 %v400, %v406
    %v410 = vmul.f32 %v402, %v407
    %v411 = vadd.f32 %v409, %v410
    %v412 = vmul.f32 %v404, %v408
    %v413 = vadd.f32 %v411, %v412
    %v414 = vld [vmem:[#allocation18] sm:$0xff]
    %v415 = vld [vmem:[#allocation18 + $0x8] sm:$0xff]
    %v416 = vld [vmem:[#allocation18 + $0x10] sm:$0xff]
    %v417 = vld [vmem:[#allocation18 + $0x18] sm:$0xff]
    %v418 = vld [vmem:[#allocation18 + $0x20] sm:$0xff]
    %v419 = vld [vmem:[#allocation18 + $0x28] sm:$0xff]
    %v420 = vld [vmem:[#allocation18 + $0x30] sm:$0xff]
    %v421 = vld [vmem:[#allocation18 + $0x38] sm:$0xff]
    %v422 = vld [vmem:[#allocation18 + $0x40] sm:$0xff]
    %v423 = vld [vmem:[#allocation18 + $0x48] sm:$0xff]
    %v424 = vld [vmem:[#allocation18 + $0x50] sm:$0xff]
    %v425 = vld [vmem:[#allocation18 + $0x58] sm:$0xff]
    %v426 = vld [vmem:[#allocation18 + $0x60] sm:$0xff]
    %v427 = vld [vmem:[#allocation18 + $0x68] sm:$0xff]
    %v428 = vadd.f32 %v414, %v393
    %v429 = vadd.f32 %v421, %v393
    %v430 = vsub.f32 %v428, %v414
    %v431 = vsub.f32 %v429, %v421
    %v432 = vmul.f32 %v430, %v405
    %v433 = vmul.f32 %v431, %v405
    %v434 = vmul.f32 %v432, %v432
    %v435 = vmul.f32 %v433, %v433
    %v436 = vadd.f32 %v434, %v435
    %v437 = vrot.slane %v436, 4
    %v438 = vadd.f32 %v436, %v437
    %v439 = vrot.slane %v438, 2
    %v440 = vadd.f32 %v438, %v439
    %v441 = vrot.slane %v440, 1
    %v442 = vadd.f32 %v440, %v441
    %v443 = vadd.f32 %v442, 0.0
    %vm444 = vcmp.gt.f32.partialorder %v406, 0.0
    %vm445 = vcmp.gt.f32.partialorder %v407, 0.0
    %vm446 = vcmp.gt.f32.partialorder %v408, 0.0
    %v447 = vsub.f32 %v414, %v415
    %v448 = vsub.f32 %v421, %v422
    %v449 = vsub.f32 %v416, %v414
    %v450 = vsub.f32 %v423, %v421
    %v451 = vsel %vm444, 1, 0
    %vm452 = vcmp.eq.s32.totalorder %v451, 1
    %v453 = vsel %vm452, %v447, %v449
    %v454 = vsel %vm452, %v448, %v450
    %v455 = vmul.f32 %v453, 15.0
    %v456 = vmul.f32 %v454, 15.0
    %v457 = vsel %vm452, %v449, %v447
    %v458 = vsel %vm452, %v450, %v448
    %v459 = vmul.f32 %v457, 15.0
    %v460 = vmul.f32 %v458, 15.0
    %v461 = vsub.f32 %v414, %v417
    %v462 = vsub.f32 %v421, %v424
    %v463 = vsub.f32 %v418, %v414
    %v464 = vsub.f32 %v425, %v421
    %v465 = vsel %vm445, 1, 0
    %vm466 = vcmp.eq.s32.totalorder %v465, 1
    %v467 = vsel %vm466, %v461, %v463
    %v468 = vsel %vm466, %v462, %v464
    %v469 = vmul.f32 %v467, 15.0
    %v470 = vmul.f32 %v468, 15.0
    %v471 = vsel %vm466, %v463, %v461
    %v472 = vsel %vm466, %v464, %v462
    %v473 = vmul.f32 %v471, 15.0
    %v474 = vmul.f32 %v472, 15.0
    %v475 = vsub.f32 %v414, %v419
    %v476 = vsub.f32 %v421, %v426
    %v477 = vsub.f32 %v420, %v414
    %v478 = vsub.f32 %v427, %v421
    %v479 = vsel %vm446, 1, 0
    %vm480 = vcmp.eq.s32.totalorder %v479, 1
    %v481 = vsel %vm480, %v475, %v477
    %v482 = vsel %vm480, %v476, %v478
    %v483 = vmul.f32 %v481, 15.0
    %v484 = vmul.f32 %v482, 15.0
    %v485 = vsel %vm480, %v477, %v475
    %v486 = vsel %vm480, %v478, %v476
    %v487 = vmul.f32 %v485, 15.0
    %v488 = vmul.f32 %v486, 15.0
    %v489 = vmul.f32 %v455, %v406
    %v490 = vmul.f32 %v456, %v406
    %v491 = vmul.f32 %v469, %v407
    %v492 = vmul.f32 %v470, %v407
    %v493 = vadd.f32 %v489, %v491
    %v494 = vadd.f32 %v490, %v492
    %v495 = vmul.f32 %v483, %v408
    %v496 = vmul.f32 %v484, %v408
    %v497 = vadd.f32 %v493, %v495
    %v498 = vadd.f32 %v494, %v496
    %v499 = vmul.f32 %v459, %v406
    %v500 = vmul.f32 %v460, %v406
    %v501 = vmul.f32 %v473, %v407
    %v502 = vmul.f32 %v474, %v407
    %v503 = vadd.f32 %v499, %v501
    %v504 = vadd.f32 %v500, %v502
    %v505 = vmul.f32 %v487, %v408
    %v506 = vmul.f32 %v488, %v408
    %v507 = vadd.f32 %v503, %v505
    %v508 = vadd.f32 %v504, %v506
    %v509 = vadd.f32 %v497, %v413
    %v510 = vadd.f32 %v498, %v413
    %v511 = vmul.f32 %v507, 80.0
    %v512 = vmul.f32 %v508, 80.0
    %v513 = vsub.f32 %v509, %v511
    %v514 = vsub.f32 %v510, %v512
    %v515 = vmul.f32 %v513, %v405
    %v516 = vmul.f32 %v514, %v405
    %v517 = vmul.f32 %v515, %v515
    %v518 = vmul.f32 %v516, %v516
    %v519 = vadd.f32 %v517, %v518
    %v520 = vrot.slane %v519, 4
    %v521 = vadd.f32 %v519, %v520
    %v522 = vrot.slane %v521, 2
    %v523 = vadd.f32 %v521, %v522
    %v524 = vrot.slane %v523, 1
    %v525 = vadd.f32 %v523, %v524
    %v526 = vadd.f32 %v525, 0.0
    %vm527 = vcmask 1040384
    %v528 = vsel %vm527, %v443, %v526
    %529 = vst [vmem:[#allocation20] sm:$0x3] %v528
    // Predicated region
    $region90: #{tpu_custom_call.1} parent=1 // pred_check
      _
    $region91: #{tpu_custom_call.1} parent=1 // pred_check_branch
      %531 = sbr.rel (0) target = $region93
    $region92: #{tpu_custom_call.1} parent=1 // pred_region
      %s533 = ssub.s32 32, 32
      %534 = vsyncadd [#allocation4], %s533
      %s536 = sshll.u32 [#allocation20], 4
      %s537 = int_to_ptr.vmem [resolvable:$true] %s536
      %539 = dma.vmem_to_hbm [thread:$0]  %s537, 32, %s12, [#allocation4]
    $region93: #{tpu_custom_call.1} parent=1 // pred_fallthru
      _
    // Predicated region
    $region94: #{tpu_custom_call.1} parent=1 // pred_check
      _
    $region95: #{tpu_custom_call.1} parent=1 // pred_check_branch
      %541 = sbr.rel (0) target = $region97
    $region96: #{tpu_custom_call.1} parent=1 // pred_region
      %542 = dma.done [#allocation4], 32
    $region97: #{tpu_custom_call.1} parent=1 // pred_fallthru
      _
    %543 = vsyncpa [#allocation3], 1
    %544 = vsyncpa [#allocation13], 1
    %545 = vsyncpa [#allocation16], 1
    %546 = vsyncpa [#allocation19], 1
    %547 = vsyncpa [#allocation4], 1
    %548 = vsyncpa [#allocation5], 1
    %549 = vsyncpa [#allocation7], 1
    %550 = vsyncpa [#allocation10], 1

</llo_original>
